<compile_context>
chip_gen: v5e
topology: v5e:2x2
jax: 0.10.0
libtpu: 0.0.40
codegen_flags: <defaults>
</compile_context>

<pallas_src>
import functools

import jax
import jax.numpy as jnp
from jax import lax
from jax.experimental import pallas as pl
from jax.experimental.pallas import tpu as pltpu


def _round_up(x, m):
    return ((x + m - 1) // m) * m


def critic_kernel(s_ref, w1_ref, b1_ref, w2_ref, b2_ref, wl_ref, bl_ref, out_ref,
                  *, mxu_dtype):
    """One batch tile: s (TILE_B, S) natural layout -> value row (1, TILE_B)."""
    x = s_ref[...]                                                        # (TILE_B, S)
    # Layer 1: contract directly on x's feature axis (w1 @ x^T). Output is
    # feature-major (H, TILE_B): wide, lane-dense MXU N dimension.
    h1 = lax.dot_general(
        w1_ref[...].astype(mxu_dtype), x.astype(mxu_dtype),
        (((1,), (1,)), ((), ())),
        preferred_element_type=jnp.float32) + b1_ref[...]
    h1 = jnp.maximum(h1, 0.0)                                             # (H, TILE_B), f32 VPU
    # Layer 2.
    h2 = jnp.dot(w2_ref[...].astype(mxu_dtype), h1.astype(mxu_dtype),
                 preferred_element_type=jnp.float32) + b2_ref[...]
    h2 = jnp.maximum(h2, 0.0)                                             # (H, TILE_B)
    # Value head Linear(hidden, 1): VPU multiply + sublane reduce (XLU slot) instead
    # of an N=1 MXU matmul; the result is already a lane-dense (1, TILE_B) row.
    v = jnp.sum(h2 * wl_ref[...], axis=0, keepdims=True) + bl_ref[0, 0]
    out_ref[...] = v.astype(out_ref.dtype)


def critic_forward(s, params, *, max_tile_b=2048, mxu_dtype=None):
    """Fused Critic forward. s: (B, state_dim). Returns (B,) values (== torch .flatten())."""
    w1, b1, w2, b2, wl, bl = params
    B, state_dim = s.shape
    hidden = w1.shape[0]

    # ---- batch tiling --------------------------------------------------------
    # Small batch: one full-array tile. Large batch: 128-multiple lane tiles with an
    # even tile count (v7x: both TensorCores get equal shares of the "parallel" axis)
    # and a partial masked edge block -- no batch padding is materialized.
    if B <= max_tile_b:
        tile_b, num_tiles = B, 1
    else:
        num_tiles = pl.cdiv(B, max_tile_b)
        if num_tiles % 2:
            num_tiles += 1
        tile_b = _round_up(pl.cdiv(B, num_tiles), 128)
        num_tiles = pl.cdiv(B, tile_b)

    # ---- MXU operand dtype ---------------------------------------------------
    # bf16 operands (f32 accumulation) only once MXU pass count rivals per-tile DMA;
    # the elementwise/bias/head path always stays f32 (v5e VPU has no bf16).
    if mxu_dtype is None:
        mxu_dtype = jnp.bfloat16 if (hidden >= 256 and tile_b >= 2048) else jnp.float32
    cast_w = jnp.dtype(mxu_dtype) != jnp.dtype(jnp.float32)
    w1_in = w1.astype(mxu_dtype) if cast_w else w1     # pre-cast once in the wrapper
    w2_in = w2.astype(mxu_dtype) if cast_w else w2

    # ---- right-sized VMEM limit (instead of a blanket 48 MiB) -----------------
    f32b = 4
    act_bytes = 2 * tile_b * state_dim * f32b                  # double-buffered input tile
    out_bytes = 2 * tile_b * f32b                               # double-buffered output row
    wgt_bytes = (hidden * state_dim + hidden * hidden + 3 * hidden + 1) * f32b
    interm_bytes = 2 * hidden * tile_b * f32b                   # h1 / h2 live values
    vmem_limit = 4 * (act_bytes + out_bytes + wgt_bytes + interm_bytes)   # 4x headroom
    vmem_limit = int(min(max(vmem_limit, 16 * 1024 * 1024), 48 * 1024 * 1024))

    const = lambda i: (0, 0)   # weights/biases: VMEM-resident, fetched once

    out = pl.pallas_call(
        functools.partial(critic_kernel, mxu_dtype=mxu_dtype),
        grid=(num_tiles,),
        out_shape=jax.ShapeDtypeStruct((1, B), jnp.float32),
        in_specs=[
            pl.BlockSpec((tile_b, state_dim), lambda i: (i, 0)),   # streamed, natural layout
            pl.BlockSpec((hidden, state_dim), const),              # W1 (out, in)
            pl.BlockSpec((hidden, 1), const),                      # b1 column
            pl.BlockSpec((hidden, hidden), const),                 # W2
            pl.BlockSpec((hidden, 1), const),                      # b2 column
            pl.BlockSpec((hidden, 1), const),                      # head weight column
            pl.BlockSpec(memory_space=pltpu.MemorySpace.SMEM),     # head bias scalar (1, 1)
        ],
        out_specs=pl.BlockSpec((1, tile_b), lambda i: (0, i)),     # lane-dense value row
        compiler_params=pltpu.CompilerParams(
            dimension_semantics=("parallel",),     # v7x: batch tiles split over 2 TensorCores
            vmem_limit_bytes=vmem_limit,
        ),
    )(s, w1_in, b1, w2_in, b2, wl, bl)

    return out.reshape(B)                          # torch: logits.flatten()


def init_params(key, state_dim, hidden_dim):
    """PyTorch nn.Linear init U(-1/sqrt(fan_in), 1/sqrt(fan_in)); native (out, in) layout."""
    ks = jax.random.split(key, 6)

    def lin(kw, kb, fan_in, fan_out):
        bound = 1.0 / jnp.sqrt(jnp.float32(fan_in))
        w = jax.random.uniform(kw, (fan_out, fan_in), jnp.float32, -bound, bound)
        b = jax.random.uniform(kb, (fan_out, 1), jnp.float32, -bound, bound)
        return w, b

    w1, b1 = lin(ks[0], ks[1], state_dim, hidden_dim)
    w2, b2 = lin(ks[2], ks[3], hidden_dim, hidden_dim)
    wl_row, bl = lin(ks[4], ks[5], hidden_dim, 1)     # wl_row: (1, hidden), bl: (1, 1)
    wl = wl_row.T                                     # head weight stored as (hidden, 1) column
    return (w1, b1, w2, b2, wl, bl)


def critic_reference(s, params, mxu_dtype=jnp.float32):
    """Pure-JAX reference mirroring the PyTorch module (optionally bf16 matmul operands)."""
    w1, b1, w2, b2, wl, bl = params
    h1 = jnp.maximum(
        jnp.dot(s.astype(mxu_dtype), w1.T.astype(mxu_dtype),
                preferred_element_type=jnp.float32) + b1.reshape(1, -1), 0.0)
    h2 = jnp.maximum(
        jnp.dot(h1.astype(mxu_dtype), w2.T.astype(mxu_dtype),
                preferred_element_type=jnp.float32) + b2.reshape(1, -1), 0.0)
    return jnp.sum(h2 * wl.reshape(1, -1), axis=-1) + bl[0, 0]


if __name__ == "__main__":
    root = jax.random.PRNGKey(0)
    keys = jax.random.split(root, 8)

    # --- 1. toy size matching the module spec (single full-array tile) ----------
    B, S, H = 8, 32, 32
    s = jax.random.normal(keys[0], (B, S), jnp.float32)
    params = init_params(keys[1], S, H)
    out = jax.block_until_ready(critic_forward(s, params))
    ref = critic_reference(s, params)
    assert out.shape == (B,), out.shape
    assert jnp.allclose(out, ref, atol=1e-3, rtol=1e-3), float(jnp.max(jnp.abs(out - ref)))

    # --- 2. larger batch that still fits one tile (no padding materialized) -----
    B2, S2, H2 = 1300, 64, 128
    s2 = jax.random.normal(keys[2], (B2, S2), jnp.float32)
    params2 = init_params(keys[3], S2, H2)
    out2 = jax.block_until_ready(critic_forward(s2, params2))
    ref2 = critic_reference(s2, params2)
    assert out2.shape == (B2,), out2.shape
    assert jnp.allclose(out2, ref2, atol=1e-3, rtol=1e-3), float(jnp.max(jnp.abs(out2 - ref2)))

    # --- 3. multi-tile path: even grid (v7x TC balance) + masked partial edge ----
    B3, S3, H3 = 5000, 64, 128            # -> 4 tiles of 1280 rows, last tile partial
    s3 = jax.random.normal(keys[4], (B3, S3), jnp.float32)
    params3 = init_params(keys[5], S3, H3)
    out3 = jax.block_until_ready(critic_forward(s3, params3, max_tile_b=2048))
    ref3 = critic_reference(s3, params3)
    assert out3.shape == (B3,), out3.shape
    assert jnp.allclose(out3, ref3, atol=1e-3, rtol=1e-3), float(jnp.max(jnp.abs(out3 - ref3)))

    # --- 4. bf16 MXU-operand path (v6e/v7x lever); f32 accumulation / elementwise -
    B4, S4, H4 = 4096, 128, 256           # -> 2 tiles of 2048 rows
    s4 = jax.random.normal(keys[6], (B4, S4), jnp.float32)
    params4 = init_params(keys[7], S4, H4)
    out4 = jax.block_until_ready(critic_forward(s4, params4, mxu_dtype=jnp.bfloat16))
    ref4 = critic_reference(s4, params4, mxu_dtype=jnp.bfloat16)
    assert out4.shape == (B4,), out4.shape
    assert jnp.allclose(out4, ref4, atol=3e-2, rtol=3e-2), float(jnp.max(jnp.abs(out4 - ref4)))

    print("KERNEL_OK")
</pallas_src>

<mosaic_0001>
module attributes {stable_mosaic.version = 11 : i64} {
  func.func @critic_kernel(%arg0: i32, %arg1: memref<8x32xf32, #tpu.memory_space<vmem>>, %arg2: memref<32x32xf32, #tpu.memory_space<vmem>>, %arg3: memref<32x1xf32, #tpu.memory_space<vmem>>, %arg4: memref<32x32xf32, #tpu.memory_space<vmem>>, %arg5: memref<32x1xf32, #tpu.memory_space<vmem>>, %arg6: memref<32x1xf32, #tpu.memory_space<vmem>>, %arg7: memref<1x1xf32, #tpu.memory_space<smem>>, %arg8: memref<1x8xf32, #tpu.memory_space<vmem>>) attributes {dimension_semantics = [#tpu.dimension_semantics<parallel>], iteration_bounds = array<i64: 1>, scalar_prefetch = 0 : i64, scratch_operands = 0 : i64, tpu.core_type = #tpu.core_type<tc>, window_params = [{transform_indices = @transform_0, window_bounds = array<i64: 8, 32>}, {pipeline_mode = #tpu.pipeline_mode<synchronous>, transform_indices = @transform_1, window_bounds = array<i64: 32, 32>}, {pipeline_mode = #tpu.pipeline_mode<synchronous>, transform_indices = @transform_2, window_bounds = array<i64: 32, 1>}, {pipeline_mode = #tpu.pipeline_mode<synchronous>, transform_indices = @transform_3, window_bounds = array<i64: 32, 32>}, {pipeline_mode = #tpu.pipeline_mode<synchronous>, transform_indices = @transform_4, window_bounds = array<i64: 32, 1>}, {pipeline_mode = #tpu.pipeline_mode<synchronous>, transform_indices = @transform_5, window_bounds = array<i64: 32, 1>}, {transform_indices = @transform_6, window_bounds = array<i64: 1, 1>}, {transform_indices = @transform_7, window_bounds = array<i64: 1, 8>}]} {
    %c0 = arith.constant 0 : index
    %c0_0 = arith.constant 0 : index
    %0 = vector.load %arg1[%c0, %c0_0] : memref<8x32xf32, #tpu.memory_space<vmem>>, vector<8x32xf32>
    %c0_1 = arith.constant 0 : index
    %c0_2 = arith.constant 0 : index
    %1 = vector.load %arg2[%c0_1, %c0_2] : memref<32x32xf32, #tpu.memory_space<vmem>>, vector<32x32xf32>
    %cst = arith.constant dense<0.000000e+00> : vector<32x8xf32>
    %2 = tpu.matmul %1, %0, %cst {dimension_numbers = #tpu.dot_dimension_numbers<[1], [1], [0], [0], [0, 0, 1, 0], [], []>} : vector<32x32xf32>, vector<8x32xf32>, vector<32x8xf32> -> vector<32x8xf32>
    %c0_3 = arith.constant 0 : index
    %c0_4 = arith.constant 0 : index
    %3 = vector.load %arg3[%c0_3, %c0_4] : memref<32x1xf32, #tpu.memory_space<vmem>>, vector<32x1xf32>
    %4 = vector.broadcast %3 : vector<32x1xf32> to vector<32x8xf32>
    %5 = arith.addf %2, %4 : vector<32x8xf32>
    %cst_5 = arith.constant 0.000000e+00 : f32
    %6 = vector.broadcast %cst_5 : f32 to vector<32x8xf32>
    %7 = arith.maximumf %5, %6 : vector<32x8xf32>
    %c0_6 = arith.constant 0 : index
    %c0_7 = arith.constant 0 : index
    %8 = vector.load %arg4[%c0_6, %c0_7] : memref<32x32xf32, #tpu.memory_space<vmem>>, vector<32x32xf32>
    %cst_8 = arith.constant dense<0.000000e+00> : vector<32x8xf32>
    %9 = tpu.matmul %8, %7, %cst_8 {dimension_numbers = #tpu.dot_dimension_numbers<[1], [0], [0], [1], [0, 0, 1, 1], [], []>} : vector<32x32xf32>, vector<32x8xf32>, vector<32x8xf32> -> vector<32x8xf32>
    %c0_9 = arith.constant 0 : index
    %c0_10 = arith.constant 0 : index
    %10 = vector.load %arg5[%c0_9, %c0_10] : memref<32x1xf32, #tpu.memory_space<vmem>>, vector<32x1xf32>
    %11 = vector.broadcast %10 : vector<32x1xf32> to vector<32x8xf32>
    %12 = arith.addf %9, %11 : vector<32x8xf32>
    %cst_11 = arith.constant 0.000000e+00 : f32
    %13 = vector.broadcast %cst_11 : f32 to vector<32x8xf32>
    %14 = arith.maximumf %12, %13 : vector<32x8xf32>
    %c0_12 = arith.constant 0 : index
    %c0_13 = arith.constant 0 : index
    %15 = vector.load %arg6[%c0_12, %c0_13] : memref<32x1xf32, #tpu.memory_space<vmem>>, vector<32x1xf32>
    %16 = vector.broadcast %15 : vector<32x1xf32> to vector<32x8xf32>
    %17 = arith.mulf %14, %16 : vector<32x8xf32>
    %cst_14 = arith.constant dense<0.000000e+00> : vector<8xf32>
    %18 = vector.multi_reduction <add>, %17, %cst_14 [0] : vector<32x8xf32> to vector<8xf32>
    %19 = vector.shape_cast %18 : vector<8xf32> to vector<1x8xf32>
    %c0_15 = arith.constant 0 : index
    %c0_16 = arith.constant 0 : index
    %20 = memref.load %arg7[%c0_15, %c0_16] : memref<1x1xf32, #tpu.memory_space<smem>>
    %21 = vector.broadcast %20 : f32 to vector<1x8xf32>
    %22 = arith.addf %19, %21 : vector<1x8xf32>
    %c0_17 = arith.constant 0 : index
    %c0_18 = arith.constant 0 : index
    %23 = vector.load %arg8[%c0_17, %c0_18] : memref<1x8xf32, #tpu.memory_space<vmem>>, vector<1x8xf32>
    tpu.vector_store %arg8[%c0_17, %c0_18], %22 {strides = array<i32>} : memref<1x8xf32, #tpu.memory_space<vmem>>, vector<1x8xf32>,
    return
  }
  func.func @transform_0(%arg0: i32) -> (i32, i32) {
    %c0_i32 = arith.constant 0 : i32
    %c0_i32_0 = arith.constant 0 : i32
    return %arg0, %c0_i32 : i32, i32
  }
  func.func @transform_1(%arg0: i32) -> (i32, i32) {
    %c0_i32 = arith.constant 0 : i32
    %c0_i32_0 = arith.constant 0 : i32
    %c0_i32_1 = arith.constant 0 : i32
    return %c0_i32, %c0_i32_0 : i32, i32
  }
  func.func @transform_2(%arg0: i32) -> (i32, i32) {
    %c0_i32 = arith.constant 0 : i32
    %c0_i32_0 = arith.constant 0 : i32
    %c0_i32_1 = arith.constant 0 : i32
    return %c0_i32, %c0_i32_0 : i32, i32
  }
  func.func @transform_3(%arg0: i32) -> (i32, i32) {
    %c0_i32 = arith.constant 0 : i32
    %c0_i32_0 = arith.constant 0 : i32
    %c0_i32_1 = arith.constant 0 : i32
    return %c0_i32, %c0_i32_0 : i32, i32
  }
  func.func @transform_4(%arg0: i32) -> (i32, i32) {
    %c0_i32 = arith.constant 0 : i32
    %c0_i32_0 = arith.constant 0 : i32
    %c0_i32_1 = arith.constant 0 : i32
    return %c0_i32, %c0_i32_0 : i32, i32
  }
  func.func @transform_5(%arg0: i32) -> (i32, i32) {
    %c0_i32 = arith.constant 0 : i32
    %c0_i32_0 = arith.constant 0 : i32
    %c0_i32_1 = arith.constant 0 : i32
    return %c0_i32, %c0_i32_0 : i32, i32
  }
  func.func @transform_6(%arg0: i32) -> (i32, i32) {
    %c0_i32 = arith.constant 0 : i32
    %c0_i32_0 = arith.constant 0 : i32
    %c0_i32_1 = arith.constant 0 : i32
    return %c0_i32, %c0_i32_0 : i32, i32
  }
  func.func @transform_7(%arg0: i32) -> (i32, i32) {
    %c0_i32 = arith.constant 0 : i32
    %c0_i32_0 = arith.constant 0 : i32
    return %c0_i32, %arg0 : i32, i32
  }
}

</mosaic_0001>

<llo_original>
// kernel: tpu_custom_call.1
$region0: #{tpu_custom_call.1}
  #allocation0 [shape = 'u32[]', space=smem, size = 0x4, offset = 0x4, fixed_abs, tag = 'smem constant byte address 0x4 - core index']
  #allocation1 [shape = 'u32[72,128]{1,0:T(1,128)}', space=vmem, size = 0x9000, scoped, tag = 'internal scratch']
  #allocation2 [shape = 'f32[1,1]{1,0:T(1,128)S(6)}', space=smem, size = 0x200, scoped, tag = 'scoped memory for tpu_custom_call.1']
  %s0 = inlined_call_operand.vmem [shape: f32[8,32], index: 0, kind: input, shape index: {}]
  %s1 = inlined_call_operand.vmem [shape: f32[32,32], index: 1, kind: input, shape index: {}]
  %s2 = inlined_call_operand.vmem [shape: f32[32,1], index: 2, kind: input, shape index: {}]
  %s3 = inlined_call_operand.vmem [shape: f32[32,32], index: 3, kind: input, shape index: {}]
  %s4 = inlined_call_operand.vmem [shape: f32[32,1], index: 4, kind: input, shape index: {}]
  %s5 = inlined_call_operand.vmem [shape: f32[32,1], index: 5, kind: input, shape index: {}]
  %s6 = inlined_call_operand.<no memory space> [shape: f32[1,1], index: 6, kind: input, shape index: {}]
  %s7 = inlined_call_operand.hbm [shape: f32[1,8], index: 7, kind: output, shape index: {}]
  %s8 = sld [smem:[#allocation0]]
  $region38: #{tpu_custom_call.1} parent=0
    _
  %s10 = ssub.s32 1, %s8
  %s11 = scalar_select 0, %s10, %s8
  %12 = sst [smem:[#allocation2]] %s6
  $region1: #{tpu_custom_call.1} parent=0
    #allocation3 [shape = 'u8[512]{0}', space=vmem, size = 0x400, scoped, tag = 'output window, operand 0, single buffered']
    #allocation4 [shape = 's32[1]{0}', space=sflag, size = 0x4, scoped, tag = 'scoped memory for tpu_custom_call.1']
    %13 = vsyncpa [#allocation4], 0
    // Predicated region
    $region2: #{tpu_custom_call.1} parent=1 // pred_check
      _
    $region3: #{tpu_custom_call.1} parent=1 // pred_check_branch
      %15 = sbr.rel (0) target = $region5
    $region4: #{tpu_custom_call.1} parent=1 // pred_region
      _
    $region5: #{tpu_custom_call.1} parent=1 // pred_fallthru
      _
    // Predicated region
    $region6: #{tpu_custom_call.1} parent=1 // pred_check
      _
    $region7: #{tpu_custom_call.1} parent=1 // pred_check_branch
      %17 = sbr.rel (0) target = $region9
    $region8: #{tpu_custom_call.1} parent=1 // pred_region
      _
    $region9: #{tpu_custom_call.1} parent=1 // pred_fallthru
      _
    // Predicated region
    $region10: #{tpu_custom_call.1} parent=1 // pred_check
      _
    $region11: #{tpu_custom_call.1} parent=1 // pred_check_branch
      %19 = sbr.rel (0) target = $region13
    $region12: #{tpu_custom_call.1} parent=1 // pred_region
      _
    $region13: #{tpu_custom_call.1} parent=1 // pred_fallthru
      _
    // Predicated region
    $region14: #{tpu_custom_call.1} parent=1 // pred_check
      _
    $region15: #{tpu_custom_call.1} parent=1 // pred_check_branch
      %21 = sbr.rel (0) target = $region17
    $region16: #{tpu_custom_call.1} parent=1 // pred_region
      _
    $region17: #{tpu_custom_call.1} parent=1 // pred_fallthru
      _
    // Predicated region
    $region18: #{tpu_custom_call.1} parent=1 // pred_check
      _
    $region19: #{tpu_custom_call.1} parent=1 // pred_check_branch
      %23 = sbr.rel (0) target = $region21
    $region20: #{tpu_custom_call.1} parent=1 // pred_region
      _
    $region21: #{tpu_custom_call.1} parent=1 // pred_fallthru
      _
    // Predicated region
    $region22: #{tpu_custom_call.1} parent=1 // pred_check
      _
    $region23: #{tpu_custom_call.1} parent=1 // pred_check_branch
      %25 = sbr.rel (0) target = $region25
    $region24: #{tpu_custom_call.1} parent=1 // pred_region
      _
    $region25: #{tpu_custom_call.1} parent=1 // pred_fallthru
      _
    // Predicated region
    $region26: #{tpu_custom_call.1} parent=1 // pred_check
      _
    $region27: #{tpu_custom_call.1} parent=1 // pred_check_branch
      %27 = sbr.rel (0) target = $region29
    $region28: #{tpu_custom_call.1} parent=1 // pred_region
      _
    $region29: #{tpu_custom_call.1} parent=1 // pred_fallthru
      _
    %v28 = vld [vmem:[%s0] sm:$0xff]
    %v29 = vld [vmem:[%s1] sm:$0xff]
    %v30 = vld [vmem:[%s1 + $0x8] sm:$0xff]
    %v31 = vld [vmem:[%s1 + $0x10] sm:$0xff]
    %v32 = vld [vmem:[%s1 + $0x18] sm:$0xff]
    %v33 = vld [vmem:[%s2] sm:$0xff]
    %v34 = vld [vmem:[%s2 + $0x8] sm:$0xff]
    %v35 = vld [vmem:[%s2 + $0x10] sm:$0xff]
    %v36 = vld [vmem:[%s2 + $0x18] sm:$0xff]
    %38 = vset.pattern.permute.xlu0 0
    %39 = vperm.xlu0 %38, %v33
    %v40 = vpop.permute.xlu0 %39
    %43 = vset.pattern.permute.xlu0 0
    %44 = vperm.xlu0 %43, %v34
    %v45 = vpop.permute.xlu0 %44
    %48 = vset.pattern.permute.xlu0 0
    %49 = vperm.xlu0 %48, %v35
    %v50 = vpop.permute.xlu0 %49
    %53 = vset.pattern.permute.xlu0 0
    %54 = vperm.xlu0 %53, %v36
    %v55 = vpop.permute.xlu0 %54
    %vm57 = vcmask 261120
    %v59 = vsel %vm57, %v29, 0
    %v62 = vsel %vm57, %v30, 0
    %v65 = vsel %vm57, %v31, 0
    %v68 = vsel %vm57, %v32, 0
    %v71 = vsel %vm57, %v28, 0
    %73 = vmatpush.xpose.msra.mxu0 0.0
    %74 = vmatpush.xpose.msra.mxu0 0.0
    %75 = vmatpush.xpose.msra.mxu0 0.0
    %76 = vmatpush.xpose.msra.mxu0 0.0
    %77 = vmatpush.xpose.msra.mxu0 0.0
    %78 = vmatpush.xpose.msra.mxu0 0.0
    %79 = vmatpush.xpose.msra.mxu0 0.0
    %80 = vmatpush.xpose.msra.mxu0 0.0
    %81 = vmatpush.xpose.msra.mxu0 0.0
    %82 = vmatpush.xpose.msra.mxu0 0.0
    %83 = vmatpush.xpose.msra.mxu0 0.0
    %84 = vmatpush.xpose.msra.mxu0 0.0
    %85 = vmatpush.xpose.msra.mxu0 0.0
    %86 = vmatpush.xpose.msra.mxu0 0.0
    %87 = vmatpush.xpose.msra.mxu0 0.0
    %88 = vmatpush.xpose.msra.mxu0 %v71
    %89 = vmatmul.f32.gmra.mxu0 %v59
    %v90 = vpop.f32.mrf.mxu0
    %v91 = vadd.f32 %v40, %v90
    %92 = vmatmul.f32.gmra.mxu0 %v62
    %v93 = vpop.f32.mrf.mxu0
    %v94 = vadd.f32 %v45, %v93
    %95 = vmatmul.f32.gmra.mxu0 %v65
    %v96 = vpop.f32.mrf.mxu0
    %v97 = vadd.f32 %v50, %v96
    %98 = vmatmul.f32.gmra.mxu0 %v68
    %v99 = vpop.f32.mrf.mxu0
    %v100 = vadd.f32 %v55, %v99
    %101 = vdwg.mxu0
    %v102 = vmax.f32 %v91, 0.0
    %v103 = vmax.f32 %v94, 0.0
    %v104 = vmax.f32 %v97, 0.0
    %v105 = vmax.f32 %v100, 0.0
    %v106 = vld [vmem:[%s3] sm:$0xff]
    %v107 = vld [vmem:[%s3 + $0x8] sm:$0xff]
    %v108 = vld [vmem:[%s3 + $0x10] sm:$0xff]
    %v109 = vld [vmem:[%s3 + $0x18] sm:$0xff]
    %v110 = vld [vmem:[%s4] sm:$0xff]
    %v111 = vld [vmem:[%s4 + $0x8] sm:$0xff]
    %v112 = vld [vmem:[%s4 + $0x10] sm:$0xff]
    %v113 = vld [vmem:[%s4 + $0x18] sm:$0xff]
    %115 = vset.pattern.permute.xlu0 0
    %116 = vperm.xlu0 %115, %v110
    %v117 = vpop.permute.xlu0 %116
    %120 = vset.pattern.permute.xlu0 0
    %121 = vperm.xlu0 %120, %v111
    %v122 = vpop.permute.xlu0 %121
    %125 = vset.pattern.permute.xlu0 0
    %126 = vperm.xlu0 %125, %v112
    %v127 = vpop.permute.xlu0 %126
    %130 = vset.pattern.permute.xlu0 0
    %131 = vperm.xlu0 %130, %v113
    %v132 = vpop.permute.xlu0 %131
    %v135 = vsel %vm57, %v106, 0
    %v138 = vsel %vm57, %v107, 0
    %v141 = vsel %vm57, %v108, 0
    %v144 = vsel %vm57, %v109, 0
    %146 = vmatpush.msra.mxu0 0.0
    %147 = vmatpush.msra.mxu0 0.0
    %148 = vmatpush.msra.mxu0 0.0
    %149 = vmatpush.msra.mxu0 0.0
    %150 = vmatpush.msra.mxu0 0.0
    %151 = vmatpush.msra.mxu0 0.0
    %152 = vmatpush.msra.mxu0 0.0
    %153 = vmatpush.msra.mxu0 0.0
    %154 = vmatpush.msra.mxu0 0.0
    %155 = vmatpush.msra.mxu0 0.0
    %156 = vmatpush.msra.mxu0 0.0
    %157 = vmatpush.msra.mxu0 0.0
    %158 = vmatpush.msra.mxu0 %v105
    %159 = vmatpush.msra.mxu0 %v104
    %160 = vmatpush.msra.mxu0 %v103
    %161 = vmatpush.msra.mxu0 %v102
    %162 = vmatmul.f32.gmra.mxu0 %v135
    %v163 = vpop.f32.mrf.mxu0
    %v164 = vadd.f32 %v117, %v163
    %165 = vmatmul.f32.gmra.mxu0 %v138
    %v166 = vpop.f32.mrf.mxu0
    %v167 = vadd.f32 %v122, %v166
    %168 = vmatmul.f32.gmra.mxu0 %v141
    %v169 = vpop.f32.mrf.mxu0
    %v170 = vadd.f32 %v127, %v169
    %171 = vmatmul.f32.gmra.mxu0 %v144
    %v172 = vpop.f32.mrf.mxu0
    %v173 = vadd.f32 %v132, %v172
    %174 = vdwg.mxu0
    %v175 = vmax.f32 %v164, 0.0
    %v176 = vmax.f32 %v167, 0.0
    %v177 = vmax.f32 %v170, 0.0
    %v178 = vmax.f32 %v173, 0.0
    %v179 = vld [vmem:[%s5] sm:$0xff]
    %v180 = vld [vmem:[%s5 + $0x8] sm:$0xff]
    %v181 = vld [vmem:[%s5 + $0x10] sm:$0xff]
    %v182 = vld [vmem:[%s5 + $0x18] sm:$0xff]
    %184 = vset.pattern.permute.xlu0 0
    %185 = vperm.xlu0 %184, %v179
    %v186 = vpop.permute.xlu0 %185
    %189 = vset.pattern.permute.xlu0 0
    %190 = vperm.xlu0 %189, %v180
    %v191 = vpop.permute.xlu0 %190
    %194 = vset.pattern.permute.xlu0 0
    %195 = vperm.xlu0 %194, %v181
    %v196 = vpop.permute.xlu0 %195
    %199 = vset.pattern.permute.xlu0 0
    %200 = vperm.xlu0 %199, %v182
    %v201 = vpop.permute.xlu0 %200
    %v203 = vmul.f32 %v175, %v186
    %v204 = vmul.f32 %v176, %v191
    %v205 = vmul.f32 %v177, %v196
    %v206 = vmul.f32 %v178, %v201
    %vm207 = vcmask 64512
    %v208 = vsel %vm207, %v203, 0.0
    %v209 = vsel %vm207, %v204, 0.0
    %v210 = vadd.f32 %v208, %v209
    %v211 = vsel %vm207, %v205, 0.0
    %v212 = vadd.f32 %v210, %v211
    %v213 = vsel %vm207, %v206, 0.0
    %v214 = vadd.f32 %v212, %v213
    %v215 = vrot.slane %v214, 4
    %v216 = vadd.f32 %v214, %v215
    %v217 = vrot.slane %v216, 2
    %v218 = vadd.f32 %v216, %v217
    %v219 = vrot.slane %v218, 1
    %v220 = vadd.f32 %v218, %v219
    %s221 = sld [smem:[#allocation2]]
    %v222 = vstv %s221
    %v223 = vadd.f32 %v220, %v222
    %vm224 = vcmask 57344
    %225 = vst.msk [vmem:[#allocation3] sm:$0x1] %vm224, %v223
    // Predicated region
    $region30: #{tpu_custom_call.1} parent=1 // pred_check
      _
    $region31: #{tpu_custom_call.1} parent=1 // pred_check_branch
      %227 = sbr.rel (0) target = $region33
    $region32: #{tpu_custom_call.1} parent=1 // pred_region
      %229 = vsyncadd [#allocation4], 0
      %s231 = sshll.u32 [#allocation3], 4
      %s232 = int_to_ptr.vmem [resolvable:$true] %s231
      %s233 = sshll.u32 %s7, 4
      %s234 = int_to_ptr.hbm [resolvable:$true] %s233
      %236 = dma.vmem_to_hbm [thread:$0]  %s232, 16, %s234, [#allocation4]
    $region33: #{tpu_custom_call.1} parent=1 // pred_fallthru
      _
    // Predicated region
    $region34: #{tpu_custom_call.1} parent=1 // pred_check
      _
    $region35: #{tpu_custom_call.1} parent=1 // pred_check_branch
      %238 = sbr.rel (0) target = $region37
    $region36: #{tpu_custom_call.1} parent=1 // pred_region
      %240 = dma.done [#allocation4], 16
    $region37: #{tpu_custom_call.1} parent=1 // pred_fallthru
      _
    %241 = vsyncpa [#allocation4], 1

</llo_original>
